<compile_context>
chip_gen: v5e
topology: v5e:2x2
jax: 0.10.0
libtpu: 0.0.40
codegen_flags: <defaults>
</compile_context>

<pallas_src>
import functools

import jax
import jax.numpy as jnp
import numpy as np
from jax.experimental import pallas as pl
from jax.experimental.pallas import tpu as pltpu


# ------------------------------ fused kernel -------------------------------

def _crf_fused_kernel(
        x_ref, y_ref, eidx_ref, wpack_ref, bnpack_ref, out_ref,
        *, steps, n_nodes, cu, cp, h, cout, offsets, eps, neg_slope):
    f32 = jnp.float32

    # ---- packed parameters: static, 8-row-aligned slices of one VMEM ref ----
    o_wu, o_wp, o_wm, o_wf1, o_wf2, o_minv, o_cminv = offsets
    wu     = wpack_ref[o_wu:o_wu + cu,       :h]       # unary Linear
    wp     = wpack_ref[o_wp:o_wp + cp,       :h]       # pairwise Linear
    wm     = wpack_ref[o_wm:o_wm + h,        :cout]    # mlp Linear
    wf1    = wpack_ref[o_wf1:o_wf1 + cout,   :cout]    # fusion (mlp-output half)
    wf2    = wpack_ref[o_wf2:o_wf2 + cout,   :cout]    # fusion (y half)
    minv   = wpack_ref[o_minv:o_minv + h,    :h]       # (I + C)^-1
    c_minv = wpack_ref[o_cminv:o_cminv + h,  :h]       # C (I + C)^-1

    def bn_row(r, w):
        return bnpack_ref[r:r + 1, :w]                  # [1, w] gamma / beta

    def bn(v, g, b, act=False):
        # Training-mode BatchNorm1d (biased batch variance) + optional
        # LeakyReLU, fused as a single-FMA epilogue of the producing matmul:
        # one pass for (mean, mean(v*v)), then o = v*scale + shift.
        m = jnp.mean(v, axis=0, keepdims=True)
        m2 = jnp.mean(v * v, axis=0, keepdims=True)
        var = jnp.maximum(m2 - m * m, 0.0)
        scale = g * jax.lax.rsqrt(var + eps)
        shift = b - m * scale
        o = v * scale + shift
        if act:
            o = jnp.where(o >= 0.0, o, neg_slope * o)
        return o

    x = x_ref[...]
    y = y_ref[...]

    # unary_net / pairwise_net: Linear(no bias) on the MXU + fused BN epilogue.
    xh = bn(jnp.dot(x, wu, preferred_element_type=f32), bn_row(0, h), bn_row(1, h))
    sh = bn(jnp.dot(y, wp, preferred_element_type=f32), bn_row(2, h), bn_row(3, h))

    # Edge incidence masks built in VMEM from int32 edge indices (never HBM).
    E = eidx_ref.shape[0]
    ii = eidx_ref[:, 0:1]                                 # [E, 1] targets i
    jj = eidx_ref[:, 1:2]                                 # [E, 1] sources j
    node_id = jax.lax.broadcasted_iota(jnp.int32, (E, n_nodes), 1)
    Gi = (node_id == ii).astype(f32)                      # [E, N] one-hot(i)
    Gj = (node_id == jj).astype(f32)                      # [E, N] one-hot(j)

    # Edge affinity e = exp(-||s_i - s_j||^2).  Scores are <= 0 so exp <= 1
    # and PyG softmax's per-group max subtraction is safely omitted.
    s_i = jnp.dot(Gi, sh, preferred_element_type=f32)     # [E, H]
    s_j = jnp.dot(Gj, sh, preferred_element_type=f32)     # [E, H]
    d = s_i - s_j
    e_vec = jnp.exp(-jnp.sum(d * d, axis=1, keepdims=True))   # [E, 1] (EUP)

    # Weighted adjacency, with the segment-softmax normalization folded into
    # its rows:  W_raw[n,m] = sum_{e: i=n, j=m} e_e ; since Gj rows are
    # one-hot, row sums of W_raw equal the per-node softmax denominators.
    W_raw = jax.lax.dot_general(
        Gi * e_vec, Gj, dimension_numbers=(((0,), (0,)), ((), ())),
        preferred_element_type=f32)                       # [N, N]
    denom = jnp.sum(W_raw, axis=1, keepdims=True) + 1e-16  # [N, 1]
    inv = pl.reciprocal(denom, approx=True)               # EUP
    inv = inv * (2.0 - denom * inv)                       # 1 Newton step (~1 ulp)
    W_adj = W_raw * inv                                   # normalized rows

    # CRF mean-field iterations:
    #   xc <- (z + agg@C) @ (I+C)^-1  ==  z@Minv + (W_adj @ xc) @ (C@Minv)
    z_minv = jnp.dot(xh, minv, preferred_element_type=f32)

    def step_fn(_, xc):
        agg = jnp.dot(W_adj, xc, preferred_element_type=f32)
        return z_minv + jnp.dot(agg, c_minv, preferred_element_type=f32)

    xc = jax.lax.fori_loop(0, steps, step_fn, xh, unroll=True)

    # mlp head: Linear + BN + LeakyReLU (fused epilogue).
    hmid = bn(jnp.dot(xc, wm, preferred_element_type=f32),
              bn_row(4, cout), bn_row(5, cout), act=True)

    # fusion_net: concat([hmid, y]) @ Wf  ==  hmid @ Wf[:C] + y @ Wf[C:].
    fused = (jnp.dot(hmid, wf1, preferred_element_type=f32) +
             jnp.dot(y, wf2, preferred_element_type=f32))
    out_ref[...] = bn(fused, bn_row(6, cout), bn_row(7, cout), act=True)


# ----------------------------- operand packing ------------------------------

def _pack_rows(mats, width):
    """Concatenate matrices along rows, each padded to an 8-row / `width`-lane
    boundary so in-kernel static slices stay (8,128)-tile aligned."""
    blocks, offsets, off = [], [], 0
    for m in mats:
        r, c = m.shape
        rp = -(-r // 8) * 8
        blk = jnp.zeros((rp, width), jnp.float32).at[:r, :c].set(
            m.astype(jnp.float32))
        blocks.append(blk)
        offsets.append(off)
        off += rp
    return jnp.concatenate(blocks, axis=0), tuple(offsets)


def _pack_bn(vectors, width):
    """Stack the 8 BatchNorm gamma/beta row-vectors into one [8, width] tile."""
    rows = [jnp.zeros((1, width), jnp.float32).at[:, :v.shape[1]].set(
        v.astype(jnp.float32)) for v in vectors]
    return jnp.concatenate(rows, axis=0)


# ------------------------------ forward pass -------------------------------

def continuous_gaussian_crf_conv(params, x, y, pos, edge_index, steps):
    N = pos.shape[0]                 # pos is accepted but unused, as in the module
    Cu, H = params['w_unary'].shape
    Cp = params['w_pair'].shape[0]
    Cout = params['w_mlp'].shape[1]
    Fmax = max(H, Cout)

    eidx = edge_index.T.astype(jnp.int32)          # [E, 2]  (i, j) per edge

    # Parameter-only preprocessing hoisted out of the kernel (computed once).
    # TODO(synk): matrix inverse has no Pallas equivalent; (I + C)^-1 depends
    # only on the parameter c, so it is computed in plain JAX.
    C = params['c'].T @ params['c']
    Minv = jnp.linalg.inv(jnp.eye(H, dtype=jnp.float32) + C)
    CMinv = C @ Minv
    wf1 = params['w_fuse'][:Cout]                  # multiplies the mlp output
    wf2 = params['w_fuse'][Cout:]                  # multiplies y

    wpack, offs = _pack_rows(
        [params['w_unary'], params['w_pair'], params['w_mlp'],
         wf1, wf2, Minv, CMinv], Fmax)
    bnpack = _pack_bn(
        [params['bn_u_g'], params['bn_u_b'], params['bn_p_g'], params['bn_p_b'],
         params['bn_m_g'], params['bn_m_b'], params['bn_f_g'], params['bn_f_b']],
        Fmax)

    kern = functools.partial(
        _crf_fused_kernel, steps=int(steps), n_nodes=N,
        cu=Cu, cp=Cp, h=H, cout=Cout, offsets=offs, eps=1e-5, neg_slope=0.01)

    inputs = (x.astype(jnp.float32), y.astype(jnp.float32), eidx, wpack, bnpack)

    return pl.pallas_call(
        kern,
        out_shape=jax.ShapeDtypeStruct((N, Cout), jnp.float32),
        grid=(1,),
        in_specs=[pl.BlockSpec(a.shape, lambda i: (0, 0)) for a in inputs],
        out_specs=pl.BlockSpec((N, Cout), lambda i: (0, 0)),
        compiler_params=pltpu.CompilerParams(
            dimension_semantics=("arbitrary",),
            # Safe on every generation; raise per-chip when scaling N/E
            # (v5e/v6e physical VMEM 128 MiB, v7x 64 MiB).
            vmem_limit_bytes=32 * 1024 * 1024),
    )(*inputs)


# -------------------------- pure-JAX reference -----------------------------

def reference_forward(params, x, y, pos, edge_index, steps):
    N = pos.shape[0]
    i_idx, j_idx = edge_index[0], edge_index[1]

    def bn(v, g, b, act=False):
        m = v.mean(0, keepdims=True)
        var = ((v - m) ** 2).mean(0, keepdims=True)
        o = (v - m) / jnp.sqrt(var + 1e-5) * g + b
        return jnp.where(o >= 0, o, 0.01 * o) if act else o

    xh = bn(x @ params['w_unary'], params['bn_u_g'], params['bn_u_b'])
    sh = bn(y @ params['w_pair'], params['bn_p_g'], params['bn_p_b'])
    d = jnp.sum((sh[i_idx] - sh[j_idx]) ** 2, axis=1, keepdims=True)
    e = jnp.exp(-d)
    denom = jax.ops.segment_sum(e, i_idx, num_segments=N)
    w = e / (denom[i_idx] + 1e-16)
    C = params['c'].T @ params['c']
    Minv = jnp.linalg.inv(jnp.eye(C.shape[0], dtype=jnp.float32) + C)
    z = xh
    xc = xh
    for _ in range(steps):
        msg = w * xc[j_idx]
        agg = jax.ops.segment_sum(msg, i_idx, num_segments=N)
        xc = (z + agg @ C) @ Minv
    o = bn(xc @ params['w_mlp'], params['bn_m_g'], params['bn_m_b'], act=True)
    o = bn(jnp.concatenate([o, y], -1) @ params['w_fuse'],
           params['bn_f_g'], params['bn_f_b'], act=True)
    return o


# ---------------------------------- main -----------------------------------

if __name__ == "__main__":
    # Module config (pairwise_channels == out_channels, as the 2*out -> out
    # fusion layer implicitly requires).
    N, E = 16, 48
    unary_channels = 8
    pairwise_channels = 16
    out_channels = pairwise_channels
    hidden_channels = 16
    steps = 2

    key = jax.random.PRNGKey(0)
    ks = jax.random.split(key, 10)

    params = {
        # Linear weights stored as [in, out] (torch stores [out, in]; x @ W.T).
        'w_unary': 0.1 * jax.random.normal(ks[0], (unary_channels, hidden_channels), jnp.float32),
        'w_pair':  0.1 * jax.random.normal(ks[1], (pairwise_channels, hidden_channels), jnp.float32),
        'w_mlp':   0.1 * jax.random.normal(ks[2], (hidden_channels, out_channels), jnp.float32),
        'w_fuse':  0.1 * jax.random.normal(ks[3], (2 * out_channels, out_channels), jnp.float32),
        # BatchNorm affine params (PyTorch init: gamma=1, beta=0), shape [1, F].
        'bn_u_g': jnp.ones((1, hidden_channels), jnp.float32),
        'bn_u_b': jnp.zeros((1, hidden_channels), jnp.float32),
        'bn_p_g': jnp.ones((1, hidden_channels), jnp.float32),
        'bn_p_b': jnp.zeros((1, hidden_channels), jnp.float32),
        'bn_m_g': jnp.ones((1, out_channels), jnp.float32),
        'bn_m_b': jnp.zeros((1, out_channels), jnp.float32),
        'bn_f_g': jnp.ones((1, out_channels), jnp.float32),
        'bn_f_b': jnp.zeros((1, out_channels), jnp.float32),
        # c initialized with nn.init.eye_ exactly as in _reset_parameters().
        'c': jnp.eye(hidden_channels, dtype=jnp.float32),
    }

    x = jax.random.normal(ks[4], (N, unary_channels), jnp.float32)
    y = jax.random.normal(ks[5], (N, pairwise_channels), jnp.float32)
    pos = jax.random.normal(ks[6], (N, 3), jnp.float32)
    edge_index = jax.random.randint(ks[7], (2, E), 0, N, dtype=jnp.int32)

    out = continuous_gaussian_crf_conv(params, x, y, pos, edge_index, steps)
    out = jax.block_until_ready(out)

    ref = jax.block_until_ready(
        reference_forward(params, x, y, pos, edge_index, steps))

    np.testing.assert_allclose(np.asarray(out), np.asarray(ref),
                               rtol=1e-4, atol=1e-4)
    print("KERNEL_OK")
</pallas_src>

<mosaic_0001>
module attributes {stable_mosaic.version = 11 : i64} {
  func.func @_crf_fused_kernel(%arg0: i32, %arg1: memref<16x8xf32, #tpu.memory_space<vmem>>, %arg2: memref<16x16xf32, #tpu.memory_space<vmem>>, %arg3: memref<48x2xi32, #tpu.memory_space<vmem>>, %arg4: memref<104x16xf32, #tpu.memory_space<vmem>>, %arg5: memref<8x16xf32, #tpu.memory_space<vmem>>, %arg6: memref<16x16xf32, #tpu.memory_space<vmem>>) attributes {dimension_semantics = [#tpu.dimension_semantics<arbitrary>], iteration_bounds = array<i64: 1>, scalar_prefetch = 0 : i64, scratch_operands = 0 : i64, tpu.core_type = #tpu.core_type<tc>, window_params = [{pipeline_mode = #tpu.pipeline_mode<synchronous>, transform_indices = @transform_0, window_bounds = array<i64: 16, 8>}, {pipeline_mode = #tpu.pipeline_mode<synchronous>, transform_indices = @transform_1, window_bounds = array<i64: 16, 16>}, {pipeline_mode = #tpu.pipeline_mode<synchronous>, transform_indices = @transform_2, window_bounds = array<i64: 48, 2>}, {pipeline_mode = #tpu.pipeline_mode<synchronous>, transform_indices = @transform_3, window_bounds = array<i64: 104, 16>}, {pipeline_mode = #tpu.pipeline_mode<synchronous>, transform_indices = @transform_4, window_bounds = array<i64: 8, 16>}, {pipeline_mode = #tpu.pipeline_mode<synchronous>, transform_indices = @transform_5, window_bounds = array<i64: 16, 16>}]} {
    %c0 = arith.constant 0 : index
    %c0_0 = arith.constant 0 : index
    %0 = vector.load %arg4[%c0, %c0_0] : memref<104x16xf32, #tpu.memory_space<vmem>>, vector<8x16xf32>
    %c8 = arith.constant 8 : index
    %c0_1 = arith.constant 0 : index
    %1 = vector.load %arg4[%c8, %c0_1] : memref<104x16xf32, #tpu.memory_space<vmem>>, vector<16x16xf32>
    %c24 = arith.constant 24 : index
    %c0_2 = arith.constant 0 : index
    %2 = vector.load %arg4[%c24, %c0_2] : memref<104x16xf32, #tpu.memory_space<vmem>>, vector<16x16xf32>
    %c40 = arith.constant 40 : index
    %c0_3 = arith.constant 0 : index
    %3 = vector.load %arg4[%c40, %c0_3] : memref<104x16xf32, #tpu.memory_space<vmem>>, vector<16x16xf32>
    %c56 = arith.constant 56 : index
    %c0_4 = arith.constant 0 : index
    %4 = vector.load %arg4[%c56, %c0_4] : memref<104x16xf32, #tpu.memory_space<vmem>>, vector<16x16xf32>
    %c72 = arith.constant 72 : index
    %c0_5 = arith.constant 0 : index
    %5 = vector.load %arg4[%c72, %c0_5] : memref<104x16xf32, #tpu.memory_space<vmem>>, vector<16x16xf32>
    %c88 = arith.constant 88 : index
    %c0_6 = arith.constant 0 : index
    %6 = vector.load %arg4[%c88, %c0_6] : memref<104x16xf32, #tpu.memory_space<vmem>>, vector<16x16xf32>
    %c0_7 = arith.constant 0 : index
    %c0_8 = arith.constant 0 : index
    %7 = vector.load %arg1[%c0_7, %c0_8] : memref<16x8xf32, #tpu.memory_space<vmem>>, vector<16x8xf32>
    %c0_9 = arith.constant 0 : index
    %c0_10 = arith.constant 0 : index
    %8 = vector.load %arg2[%c0_9, %c0_10] : memref<16x16xf32, #tpu.memory_space<vmem>>, vector<16x16xf32>
    %cst = arith.constant dense<0.000000e+00> : vector<16x16xf32>
    %9 = tpu.matmul %7, %0, %cst {dimension_numbers = #tpu.dot_dimension_numbers<[1], [0], [0], [1], [0, 0, 1, 1], [], []>} : vector<16x8xf32>, vector<8x16xf32>, vector<16x16xf32> -> vector<16x16xf32>
    %c0_11 = arith.constant 0 : index
    %c0_12 = arith.constant 0 : index
    %10 = vector.load %arg5[%c0_11, %c0_12] : memref<8x16xf32, #tpu.memory_space<vmem>>, vector<1x16xf32>
    %c1 = arith.constant 1 : index
    %c0_13 = arith.constant 0 : index
    %11 = vector.load %arg5[%c1, %c0_13] : memref<8x16xf32, #tpu.memory_space<vmem>>, vector<1x16xf32>
    %cst_14 = arith.constant dense<0.000000e+00> : vector<16xf32>
    %12 = vector.multi_reduction <add>, %9, %cst_14 [0] : vector<16x16xf32> to vector<16xf32>
    %13 = vector.shape_cast %12 : vector<16xf32> to vector<1x16xf32>
    %cst_15 = arith.constant 1.600000e+01 : f32
    %14 = vector.broadcast %cst_15 : f32 to vector<1x16xf32>
    %15 = arith.divf %13, %14 : vector<1x16xf32>
    %16 = arith.mulf %9, %9 : vector<16x16xf32>
    %cst_16 = arith.constant dense<0.000000e+00> : vector<16xf32>
    %17 = vector.multi_reduction <add>, %16, %cst_16 [0] : vector<16x16xf32> to vector<16xf32>
    %18 = vector.shape_cast %17 : vector<16xf32> to vector<1x16xf32>
    %cst_17 = arith.constant 1.600000e+01 : f32
    %19 = vector.broadcast %cst_17 : f32 to vector<1x16xf32>
    %20 = arith.divf %18, %19 : vector<1x16xf32>
    %21 = arith.mulf %15, %15 : vector<1x16xf32>
    %22 = arith.subf %20, %21 : vector<1x16xf32>
    %cst_18 = arith.constant 0.000000e+00 : f32
    %23 = vector.broadcast %cst_18 : f32 to vector<1x16xf32>
    %24 = arith.maximumf %22, %23 : vector<1x16xf32>
    %cst_19 = arith.constant 9.99999974E-6 : f32
    %25 = vector.broadcast %cst_19 : f32 to vector<1x16xf32>
    %26 = arith.addf %24, %25 : vector<1x16xf32>
    %27 = math.rsqrt %26 : vector<1x16xf32>
    %28 = arith.mulf %10, %27 : vector<1x16xf32>
    %29 = arith.mulf %15, %28 : vector<1x16xf32>
    %30 = arith.subf %11, %29 : vector<1x16xf32>
    %31 = vector.broadcast %28 : vector<1x16xf32> to vector<16x16xf32>
    %32 = arith.mulf %9, %31 : vector<16x16xf32>
    %33 = vector.broadcast %30 : vector<1x16xf32> to vector<16x16xf32>
    %34 = arith.addf %32, %33 : vector<16x16xf32>
    %cst_20 = arith.constant dense<0.000000e+00> : vector<16x16xf32>
    %35 = tpu.matmul %8, %1, %cst_20 {dimension_numbers = #tpu.dot_dimension_numbers<[1], [0], [0], [1], [0, 0, 1, 1], [], []>} : vector<16x16xf32>, vector<16x16xf32>, vector<16x16xf32> -> vector<16x16xf32>
    %c2 = arith.constant 2 : index
    %c0_21 = arith.constant 0 : index
    %36 = vector.load %arg5[%c2, %c0_21] : memref<8x16xf32, #tpu.memory_space<vmem>>, vector<1x16xf32>
    %c3 = arith.constant 3 : index
    %c0_22 = arith.constant 0 : index
    %37 = vector.load %arg5[%c3, %c0_22] : memref<8x16xf32, #tpu.memory_space<vmem>>, vector<1x16xf32>
    %cst_23 = arith.constant dense<0.000000e+00> : vector<16xf32>
    %38 = vector.multi_reduction <add>, %35, %cst_23 [0] : vector<16x16xf32> to vector<16xf32>
    %39 = vector.shape_cast %38 : vector<16xf32> to vector<1x16xf32>
    %cst_24 = arith.constant 1.600000e+01 : f32
    %40 = vector.broadcast %cst_24 : f32 to vector<1x16xf32>
    %41 = arith.divf %39, %40 : vector<1x16xf32>
    %42 = arith.mulf %35, %35 : vector<16x16xf32>
    %cst_25 = arith.constant dense<0.000000e+00> : vector<16xf32>
    %43 = vector.multi_reduction <add>, %42, %cst_25 [0] : vector<16x16xf32> to vector<16xf32>
    %44 = vector.shape_cast %43 : vector<16xf32> to vector<1x16xf32>
    %cst_26 = arith.constant 1.600000e+01 : f32
    %45 = vector.broadcast %cst_26 : f32 to vector<1x16xf32>
    %46 = arith.divf %44, %45 : vector<1x16xf32>
    %47 = arith.mulf %41, %41 : vector<1x16xf32>
    %48 = arith.subf %46, %47 : vector<1x16xf32>
    %cst_27 = arith.constant 0.000000e+00 : f32
    %49 = vector.broadcast %cst_27 : f32 to vector<1x16xf32>
    %50 = arith.maximumf %48, %49 : vector<1x16xf32>
    %cst_28 = arith.constant 9.99999974E-6 : f32
    %51 = vector.broadcast %cst_28 : f32 to vector<1x16xf32>
    %52 = arith.addf %50, %51 : vector<1x16xf32>
    %53 = math.rsqrt %52 : vector<1x16xf32>
    %54 = arith.mulf %36, %53 : vector<1x16xf32>
    %55 = arith.mulf %41, %54 : vector<1x16xf32>
    %56 = arith.subf %37, %55 : vector<1x16xf32>
    %57 = vector.broadcast %54 : vector<1x16xf32> to vector<16x16xf32>
    %58 = arith.mulf %35, %57 : vector<16x16xf32>
    %59 = vector.broadcast %56 : vector<1x16xf32> to vector<16x16xf32>
    %60 = arith.addf %58, %59 : vector<16x16xf32>
    %c0_29 = arith.constant 0 : index
    %c0_30 = arith.constant 0 : index
    %61 = vector.load %arg3[%c0_29, %c0_30] : memref<48x2xi32, #tpu.memory_space<vmem>>, vector<48x1xi32>
    %c0_31 = arith.constant 0 : index
    %c1_32 = arith.constant 1 : index
    %62 = vector.load %arg3[%c0_31, %c1_32] : memref<48x2xi32, #tpu.memory_space<vmem>>, vector<48x1xi32>
    %63 = tpu.iota {dimensions = array<i32: 1>} : vector<48x16xi32>
    %64 = vector.broadcast %61 : vector<48x1xi32> to vector<48x16xi32>
    %65 = arith.cmpi eq, %63, %64 : vector<48x16xi32>
    %66 = arith.extui %65 : vector<48x16xi1> to vector<48x16xi32>
    %67 = arith.sitofp %66 : vector<48x16xi32> to vector<48x16xf32>
    %68 = vector.broadcast %62 : vector<48x1xi32> to vector<48x16xi32>
    %69 = arith.cmpi eq, %63, %68 : vector<48x16xi32>
    %70 = arith.extui %69 : vector<48x16xi1> to vector<48x16xi32>
    %71 = arith.sitofp %70 : vector<48x16xi32> to vector<48x16xf32>
    %cst_33 = arith.constant dense<0.000000e+00> : vector<48x16xf32>
    %72 = tpu.matmul %67, %60, %cst_33 {dimension_numbers = #tpu.dot_dimension_numbers<[1], [0], [0], [1], [0, 0, 1, 1], [], []>} : vector<48x16xf32>, vector<16x16xf32>, vector<48x16xf32> -> vector<48x16xf32>
    %cst_34 = arith.constant dense<0.000000e+00> : vector<48x16xf32>
    %73 = tpu.matmul %71, %60, %cst_34 {dimension_numbers = #tpu.dot_dimension_numbers<[1], [0], [0], [1], [0, 0, 1, 1], [], []>} : vector<48x16xf32>, vector<16x16xf32>, vector<48x16xf32> -> vector<48x16xf32>
    %74 = arith.subf %72, %73 : vector<48x16xf32>
    %75 = arith.mulf %74, %74 : vector<48x16xf32>
    %cst_35 = arith.constant dense<0.000000e+00> : vector<48xf32>
    %76 = vector.multi_reduction <add>, %75, %cst_35 [1] : vector<48x16xf32> to vector<48xf32>
    %77 = vector.shape_cast %76 : vector<48xf32> to vector<48x1xf32>
    %cst_36 = arith.constant 0.000000e+00 : f32
    %78 = vector.broadcast %cst_36 : f32 to vector<48x1xf32>
    %79 = arith.subf %78, %77 : vector<48x1xf32>
    %80 = math.exp %79 : vector<48x1xf32>
    %81 = vector.broadcast %80 : vector<48x1xf32> to vector<48x16xf32>
    %82 = arith.mulf %67, %81 : vector<48x16xf32>
    %cst_37 = arith.constant dense<0.000000e+00> : vector<16x16xf32>
    %83 = tpu.matmul %82, %71, %cst_37 {dimension_numbers = #tpu.dot_dimension_numbers<[0], [0], [1], [1], [0, 1, 1, 1], [], []>} : vector<48x16xf32>, vector<48x16xf32>, vector<16x16xf32> -> vector<16x16xf32>
    %cst_38 = arith.constant dense<0.000000e+00> : vector<16xf32>
    %84 = vector.multi_reduction <add>, %83, %cst_38 [1] : vector<16x16xf32> to vector<16xf32>
    %85 = vector.shape_cast %84 : vector<16xf32> to vector<16x1xf32>
    %cst_39 = arith.constant 1.000000e-16 : f32
    %86 = vector.broadcast %cst_39 : f32 to vector<16x1xf32>
    %87 = arith.addf %85, %86 : vector<16x1xf32>
    %88 = tpu.reciprocal %87 {approx = true} : vector<16x1xf32> -> vector<16x1xf32>
    %89 = arith.mulf %87, %88 : vector<16x1xf32>
    %cst_40 = arith.constant 2.000000e+00 : f32
    %90 = vector.broadcast %cst_40 : f32 to vector<16x1xf32>
    %91 = arith.subf %90, %89 : vector<16x1xf32>
    %92 = arith.mulf %88, %91 : vector<16x1xf32>
    %93 = vector.broadcast %92 : vector<16x1xf32> to vector<16x16xf32>
    %94 = arith.mulf %83, %93 : vector<16x16xf32>
    %cst_41 = arith.constant dense<0.000000e+00> : vector<16x16xf32>
    %95 = tpu.matmul %34, %5, %cst_41 {dimension_numbers = #tpu.dot_dimension_numbers<[1], [0], [0], [1], [0, 0, 1, 1], [], []>} : vector<16x16xf32>, vector<16x16xf32>, vector<16x16xf32> -> vector<16x16xf32>
    %c0_i32 = arith.constant 0 : i32
    %cst_42 = arith.constant dense<0.000000e+00> : vector<16x16xf32>
    %96 = tpu.matmul %94, %34, %cst_42 {dimension_numbers = #tpu.dot_dimension_numbers<[1], [0], [0], [1], [0, 0, 1, 1], [], []>} : vector<16x16xf32>, vector<16x16xf32>, vector<16x16xf32> -> vector<16x16xf32>
    %cst_43 = arith.constant dense<0.000000e+00> : vector<16x16xf32>
    %97 = tpu.matmul %96, %6, %cst_43 {dimension_numbers = #tpu.dot_dimension_numbers<[1], [0], [0], [1], [0, 0, 1, 1], [], []>} : vector<16x16xf32>, vector<16x16xf32>, vector<16x16xf32> -> vector<16x16xf32>
    %98 = arith.addf %95, %97 : vector<16x16xf32>
    %c1_i32 = arith.constant 1 : i32
    %cst_44 = arith.constant dense<0.000000e+00> : vector<16x16xf32>
    %99 = tpu.matmul %94, %98, %cst_44 {dimension_numbers = #tpu.dot_dimension_numbers<[1], [0], [0], [1], [0, 0, 1, 1], [], []>} : vector<16x16xf32>, vector<16x16xf32>, vector<16x16xf32> -> vector<16x16xf32>
    %cst_45 = arith.constant dense<0.000000e+00> : vector<16x16xf32>
    %100 = tpu.matmul %99, %6, %cst_45 {dimension_numbers = #tpu.dot_dimension_numbers<[1], [0], [0], [1], [0, 0, 1, 1], [], []>} : vector<16x16xf32>, vector<16x16xf32>, vector<16x16xf32> -> vector<16x16xf32>
    %101 = arith.addf %95, %100 : vector<16x16xf32>
    %cst_46 = arith.constant dense<0.000000e+00> : vector<16x16xf32>
    %102 = tpu.matmul %101, %2, %cst_46 {dimension_numbers = #tpu.dot_dimension_numbers<[1], [0], [0], [1], [0, 0, 1, 1], [], []>} : vector<16x16xf32>, vector<16x16xf32>, vector<16x16xf32> -> vector<16x16xf32>
    %c4 = arith.constant 4 : index
    %c0_47 = arith.constant 0 : index
    %103 = vector.load %arg5[%c4, %c0_47] : memref<8x16xf32, #tpu.memory_space<vmem>>, vector<1x16xf32>
    %c5 = arith.constant 5 : index
    %c0_48 = arith.constant 0 : index
    %104 = vector.load %arg5[%c5, %c0_48] : memref<8x16xf32, #tpu.memory_space<vmem>>, vector<1x16xf32>
    %cst_49 = arith.constant dense<0.000000e+00> : vector<16xf32>
    %105 = vector.multi_reduction <add>, %102, %cst_49 [0] : vector<16x16xf32> to vector<16xf32>
    %106 = vector.shape_cast %105 : vector<16xf32> to vector<1x16xf32>
    %cst_50 = arith.constant 1.600000e+01 : f32
    %107 = vector.broadcast %cst_50 : f32 to vector<1x16xf32>
    %108 = arith.divf %106, %107 : vector<1x16xf32>
    %109 = arith.mulf %102, %102 : vector<16x16xf32>
    %cst_51 = arith.constant dense<0.000000e+00> : vector<16xf32>
    %110 = vector.multi_reduction <add>, %109, %cst_51 [0] : vector<16x16xf32> to vector<16xf32>
    %111 = vector.shape_cast %110 : vector<16xf32> to vector<1x16xf32>
    %cst_52 = arith.constant 1.600000e+01 : f32
    %112 = vector.broadcast %cst_52 : f32 to vector<1x16xf32>
    %113 = arith.divf %111, %112 : vector<1x16xf32>
    %114 = arith.mulf %108, %108 : vector<1x16xf32>
    %115 = arith.subf %113, %114 : vector<1x16xf32>
    %cst_53 = arith.constant 0.000000e+00 : f32
    %116 = vector.broadcast %cst_53 : f32 to vector<1x16xf32>
    %117 = arith.maximumf %115, %116 : vector<1x16xf32>
    %cst_54 = arith.constant 9.99999974E-6 : f32
    %118 = vector.broadcast %cst_54 : f32 to vector<1x16xf32>
    %119 = arith.addf %117, %118 : vector<1x16xf32>
    %120 = math.rsqrt %119 : vector<1x16xf32>
    %121 = arith.mulf %103, %120 : vector<1x16xf32>
    %122 = arith.mulf %108, %121 : vector<1x16xf32>
    %123 = arith.subf %104, %122 : vector<1x16xf32>
    %124 = vector.broadcast %121 : vector<1x16xf32> to vector<16x16xf32>
    %125 = arith.mulf %102, %124 : vector<16x16xf32>
    %126 = vector.broadcast %123 : vector<1x16xf32> to vector<16x16xf32>
    %127 = arith.addf %125, %126 : vector<16x16xf32>
    %cst_55 = arith.constant 0.000000e+00 : f32
    %128 = vector.broadcast %cst_55 : f32 to vector<16x16xf32>
    %129 = arith.cmpf oge, %127, %128 : vector<16x16xf32>
    %cst_56 = arith.constant 0.00999999977 : f32
    %130 = vector.broadcast %cst_56 : f32 to vector<16x16xf32>
    %131 = arith.mulf %130, %127 : vector<16x16xf32>
    %132 = arith.select %129, %127, %131 : vector<16x16xi1>, vector<16x16xf32>
    %cst_57 = arith.constant dense<0.000000e+00> : vector<16x16xf32>
    %133 = tpu.matmul %132, %3, %cst_57 {dimension_numbers = #tpu.dot_dimension_numbers<[1], [0], [0], [1], [0, 0, 1, 1], [], []>} : vector<16x16xf32>, vector<16x16xf32>, vector<16x16xf32> -> vector<16x16xf32>
    %cst_58 = arith.constant dense<0.000000e+00> : vector<16x16xf32>
    %134 = tpu.matmul %8, %4, %cst_58 {dimension_numbers = #tpu.dot_dimension_numbers<[1], [0], [0], [1], [0, 0, 1, 1], [], []>} : vector<16x16xf32>, vector<16x16xf32>, vector<16x16xf32> -> vector<16x16xf32>
    %135 = arith.addf %133, %134 : vector<16x16xf32>
    %c6 = arith.constant 6 : index
    %c0_59 = arith.constant 0 : index
    %136 = vector.load %arg5[%c6, %c0_59] : memref<8x16xf32, #tpu.memory_space<vmem>>, vector<1x16xf32>
    %c7 = arith.constant 7 : index
    %c0_60 = arith.constant 0 : index
    %137 = vector.load %arg5[%c7, %c0_60] : memref<8x16xf32, #tpu.memory_space<vmem>>, vector<1x16xf32>
    %cst_61 = arith.constant dense<0.000000e+00> : vector<16xf32>
    %138 = vector.multi_reduction <add>, %135, %cst_61 [0] : vector<16x16xf32> to vector<16xf32>
    %139 = vector.shape_cast %138 : vector<16xf32> to vector<1x16xf32>
    %cst_62 = arith.constant 1.600000e+01 : f32
    %140 = vector.broadcast %cst_62 : f32 to vector<1x16xf32>
    %141 = arith.divf %139, %140 : vector<1x16xf32>
    %142 = arith.mulf %135, %135 : vector<16x16xf32>
    %cst_63 = arith.constant dense<0.000000e+00> : vector<16xf32>
    %143 = vector.multi_reduction <add>, %142, %cst_63 [0] : vector<16x16xf32> to vector<16xf32>
    %144 = vector.shape_cast %143 : vector<16xf32> to vector<1x16xf32>
    %cst_64 = arith.constant 1.600000e+01 : f32
    %145 = vector.broadcast %cst_64 : f32 to vector<1x16xf32>
    %146 = arith.divf %144, %145 : vector<1x16xf32>
    %147 = arith.mulf %141, %141 : vector<1x16xf32>
    %148 = arith.subf %146, %147 : vector<1x16xf32>
    %cst_65 = arith.constant 0.000000e+00 : f32
    %149 = vector.broadcast %cst_65 : f32 to vector<1x16xf32>
    %150 = arith.maximumf %148, %149 : vector<1x16xf32>
    %cst_66 = arith.constant 9.99999974E-6 : f32
    %151 = vector.broadcast %cst_66 : f32 to vector<1x16xf32>
    %152 = arith.addf %150, %151 : vector<1x16xf32>
    %153 = math.rsqrt %152 : vector<1x16xf32>
    %154 = arith.mulf %136, %153 : vector<1x16xf32>
    %155 = arith.mulf %141, %154 : vector<1x16xf32>
    %156 = arith.subf %137, %155 : vector<1x16xf32>
    %157 = vector.broadcast %154 : vector<1x16xf32> to vector<16x16xf32>
    %158 = arith.mulf %135, %157 : vector<16x16xf32>
    %159 = vector.broadcast %156 : vector<1x16xf32> to vector<16x16xf32>
    %160 = arith.addf %158, %159 : vector<16x16xf32>
    %cst_67 = arith.constant 0.000000e+00 : f32
    %161 = vector.broadcast %cst_67 : f32 to vector<16x16xf32>
    %162 = arith.cmpf oge, %160, %161 : vector<16x16xf32>
    %cst_68 = arith.constant 0.00999999977 : f32
    %163 = vector.broadcast %cst_68 : f32 to vector<16x16xf32>
    %164 = arith.mulf %163, %160 : vector<16x16xf32>
    %165 = arith.select %162, %160, %164 : vector<16x16xi1>, vector<16x16xf32>
    %c0_69 = arith.constant 0 : index
    %c0_70 = arith.constant 0 : index
    %166 = vector.load %arg6[%c0_69, %c0_70] : memref<16x16xf32, #tpu.memory_space<vmem>>, vector<16x16xf32>
    tpu.vector_store %arg6[%c0_69, %c0_70], %165 {strides = array<i32>} : memref<16x16xf32, #tpu.memory_space<vmem>>, vector<16x16xf32>,
    return
  }
  func.func @transform_0(%arg0: i32) -> (i32, i32) {
    %c0_i32 = arith.constant 0 : i32
    %c0_i32_0 = arith.constant 0 : i32
    %c0_i32_1 = arith.constant 0 : i32
    return %c0_i32, %c0_i32_0 : i32, i32
  }
  func.func @transform_1(%arg0: i32) -> (i32, i32) {
    %c0_i32 = arith.constant 0 : i32
    %c0_i32_0 = arith.constant 0 : i32
    %c0_i32_1 = arith.constant 0 : i32
    return %c0_i32, %c0_i32_0 : i32, i32
  }
  func.func @transform_2(%arg0: i32) -> (i32, i32) {
    %c0_i32 = arith.constant 0 : i32
    %c0_i32_0 = arith.constant 0 : i32
    %c0_i32_1 = arith.constant 0 : i32
    return %c0_i32, %c0_i32_0 : i32, i32
  }
  func.func @transform_3(%arg0: i32) -> (i32, i32) {
    %c0_i32 = arith.constant 0 : i32
    %c0_i32_0 = arith.constant 0 : i32
    %c0_i32_1 = arith.constant 0 : i32
    return %c0_i32, %c0_i32_0 : i32, i32
  }
  func.func @transform_4(%arg0: i32) -> (i32, i32) {
    %c0_i32 = arith.constant 0 : i32
    %c0_i32_0 = arith.constant 0 : i32
    %c0_i32_1 = arith.constant 0 : i32
    return %c0_i32, %c0_i32_0 : i32, i32
  }
  func.func @transform_5(%arg0: i32) -> (i32, i32) {
    %c0_i32 = arith.constant 0 : i32
    %c0_i32_0 = arith.constant 0 : i32
    %c0_i32_1 = arith.constant 0 : i32
    return %c0_i32, %c0_i32_0 : i32, i32
  }
}

</mosaic_0001>

<llo_original>
// kernel: tpu_custom_call.1
$region0: #{tpu_custom_call.1}
  #allocation0 [shape = 'u32[]', space=smem, size = 0x4, offset = 0x4, fixed_abs, tag = 'smem constant byte address 0x4 - core index']
  #allocation1 [shape = 'u32[72,128]{1,0:T(1,128)}', space=vmem, size = 0x9000, scoped, tag = 'internal scratch']
  %s0 = inlined_call_operand.vmem [shape: f32[16,8], index: 0, kind: input, shape index: {}]
  %s1 = inlined_call_operand.vmem [shape: f32[16,16], index: 1, kind: input, shape index: {}]
  %s2 = inlined_call_operand.vmem [shape: s32[48,2], index: 2, kind: input, shape index: {}]
  %s3 = inlined_call_operand.vmem [shape: f32[104,16], index: 3, kind: input, shape index: {}]
  %s4 = inlined_call_operand.vmem [shape: f32[8,16], index: 4, kind: input, shape index: {}]
  %s5 = inlined_call_operand.hbm [shape: f32[16,16], index: 5, kind: output, shape index: {}]
  %s6 = sld [smem:[#allocation0]]
  $region30: #{tpu_custom_call.1} parent=0
    _
  %s8 = ssub.s32 1, %s6
  %s9 = scalar_select 0, %s8, %s6
  $region1: #{tpu_custom_call.1} parent=0
    #allocation2 [shape = 'u8[8192]{0}', space=vmem, size = 0x2000, scoped, tag = 'output window, operand 0, single buffered']
    #allocation3 [shape = 's32[1]{0}', space=sflag, size = 0x4, scoped, tag = 'scoped memory for tpu_custom_call.1']
    %10 = vsyncpa [#allocation3], 0
    // Predicated region
    $region2: #{tpu_custom_call.1} parent=1 // pred_check
      _
    $region3: #{tpu_custom_call.1} parent=1 // pred_check_branch
      %12 = sbr.rel (0) target = $region5
    $region4: #{tpu_custom_call.1} parent=1 // pred_region
      _
    $region5: #{tpu_custom_call.1} parent=1 // pred_fallthru
      _
    // Predicated region
    $region6: #{tpu_custom_call.1} parent=1 // pred_check
      _
    $region7: #{tpu_custom_call.1} parent=1 // pred_check_branch
      %14 = sbr.rel (0) target = $region9
    $region8: #{tpu_custom_call.1} parent=1 // pred_region
      _
    $region9: #{tpu_custom_call.1} parent=1 // pred_fallthru
      _
    // Predicated region
    $region10: #{tpu_custom_call.1} parent=1 // pred_check
      _
    $region11: #{tpu_custom_call.1} parent=1 // pred_check_branch
      %16 = sbr.rel (0) target = $region13
    $region12: #{tpu_custom_call.1} parent=1 // pred_region
      _
    $region13: #{tpu_custom_call.1} parent=1 // pred_fallthru
      _
    // Predicated region
    $region14: #{tpu_custom_call.1} parent=1 // pred_check
      _
    $region15: #{tpu_custom_call.1} parent=1 // pred_check_branch
      %18 = sbr.rel (0) target = $region17
    $region16: #{tpu_custom_call.1} parent=1 // pred_region
      _
    $region17: #{tpu_custom_call.1} parent=1 // pred_fallthru
      _
    // Predicated region
    $region18: #{tpu_custom_call.1} parent=1 // pred_check
      _
    $region19: #{tpu_custom_call.1} parent=1 // pred_check_branch
      %20 = sbr.rel (0) target = $region21
    $region20: #{tpu_custom_call.1} parent=1 // pred_region
      _
    $region21: #{tpu_custom_call.1} parent=1 // pred_fallthru
      _
    %v21 = vld [vmem:[%s3] sm:$0xff]
    %v22 = vld [vmem:[%s3 + $0x8] sm:$0xff]
    %v23 = vld [vmem:[%s3 + $0x10] sm:$0xff]
    %v24 = vld [vmem:[%s3 + $0x18] sm:$0xff]
    %v25 = vld [vmem:[%s3 + $0x20] sm:$0xff]
    %v26 = vld [vmem:[%s3 + $0x28] sm:$0xff]
    %v27 = vld [vmem:[%s3 + $0x30] sm:$0xff]
    %v28 = vld [vmem:[%s3 + $0x38] sm:$0xff]
    %v29 = vld [vmem:[%s3 + $0x40] sm:$0xff]
    %v30 = vld [vmem:[%s3 + $0x48] sm:$0xff]
    %v31 = vld [vmem:[%s3 + $0x50] sm:$0xff]
    %v32 = vld [vmem:[%s3 + $0x58] sm:$0xff]
    %v33 = vld [vmem:[%s3 + $0x60] sm:$0xff]
    %v34 = vld [vmem:[%s0] sm:$0xff]
    %v35 = vld [vmem:[%s0 + $0x8] sm:$0xff]
    %v36 = vld [vmem:[%s1] sm:$0xff]
    %v37 = vld [vmem:[%s1 + $0x8] sm:$0xff]
    %vm38 = vcmask 64512
    %v40 = vsel %vm38, %v34, 0
    %v43 = vsel %vm38, %v35, 0
    %45 = vmatpush.msra.mxu0 0.0
    %46 = vmatpush.msra.mxu0 0.0
    %47 = vmatpush.msra.mxu0 0.0
    %48 = vmatpush.msra.mxu0 0.0
    %49 = vmatpush.msra.mxu0 0.0
    %50 = vmatpush.msra.mxu0 0.0
    %51 = vmatpush.msra.mxu0 0.0
    %52 = vmatpush.msra.mxu0 0.0
    %53 = vmatpush.msra.mxu0 0.0
    %54 = vmatpush.msra.mxu0 0.0
    %55 = vmatpush.msra.mxu0 0.0
    %56 = vmatpush.msra.mxu0 0.0
    %57 = vmatpush.msra.mxu0 0.0
    %58 = vmatpush.msra.mxu0 0.0
    %59 = vmatpush.msra.mxu0 0.0
    %60 = vmatpush.msra.mxu0 %v21
    %61 = vmatmul.f32.gmra.mxu0 %v40
    %v62 = vpop.f32.mrf.mxu0
    %v63 = vadd.f32 0.0, %v62
    %64 = vmatmul.f32.gmra.mxu0 %v43
    %v65 = vpop.f32.mrf.mxu0
    %v66 = vadd.f32 0.0, %v65
    %67 = vdwg.mxu0
    %v68 = vld [vmem:[%s4] sm:$0x1]
    %v69 = vld [vmem:[%s4 + $0x1] sm:$0x1]
    %vm70 = vcmask 130048
    %v71 = vsel %vm70, %v63, 0.0
    %v72 = vsel %vm70, %v66, 0.0
    %v73 = vadd.f32 %v71, %v72
    %v74 = vrot.slane %v73, 4
    %v75 = vadd.f32 %v73, %v74
    %v76 = vrot.slane %v75, 2
    %v77 = vadd.f32 %v75, %v76
    %v78 = vrot.slane %v77, 1
    %v79 = vadd.f32 %v77, %v78
    %v80 = vrcp.pop 16.0
    %v81 = vmul.f32 16.0, %v80
    %v82 = vsub.f32 1.0, %v81
    %v83 = vmul.f32 %v80, %v82
    %v84 = vadd.f32 %v80, %v83
    %vm85 = vweird.f32 %v80
    %v86 = vsel %vm85, %v80, %v84
    %v87 = vmul.f32 %v79, %v86
    %v88 = vmul.f32 %v63, %v63
    %v89 = vmul.f32 %v66, %v66
    %v90 = vsel %vm70, %v88, 0.0
    %v91 = vsel %vm70, %v89, 0.0
    %v92 = vadd.f32 %v90, %v91
    %v93 = vrot.slane %v92, 4
    %v94 = vadd.f32 %v92, %v93
    %v95 = vrot.slane %v94, 2
    %v96 = vadd.f32 %v94, %v95
    %v97 = vrot.slane %v96, 1
    %v98 = vadd.f32 %v96, %v97
    %v99 = vmul.f32 %v98, %v86
    %v100 = vmul.f32 %v87, %v87
    %v101 = vsub.f32 %v99, %v100
    %v102 = vmax.f32 %v101, 0.0
    %v103 = vadd.f32 %v102, 1e-05
    %v104 = vrsqrt.pop %v103
    %v105 = vmul.f32 %v104, %v103
    %v106 = vmul.f32 %v105, %v104
    %v107 = vmul.f32 0.5, %v106
    %v108 = vsub.f32 1.5, %v107
    %v109 = vmul.f32 %v104, %v108
    %vm110 = vweird.f32 %v103
    %vm111 = vweird.f32 %v104
    %vm112 = vmor %vm110, %vm111
    %v113 = vsel %vm112, %v104, %v109
    %v114 = vmul.f32 %v68, %v113
    %v115 = vmul.f32 %v87, %v114
    %v116 = vsub.f32 %v69, %v115
    %v117 = vperm.slane %v114, 0
    %v118 = vmul.f32 %v63, %v117
    %v119 = vmul.f32 %v66, %v117
    %v120 = vperm.slane %v116, 0
    %v121 = vadd.f32 %v118, %v120
    %v122 = vadd.f32 %v119, %v120
    %v124 = vsel %vm70, %v36, 0
    %v127 = vsel %vm70, %v37, 0
    %129 = vmatpush.msra.mxu0 0.0
    %130 = vmatpush.msra.mxu0 0.0
    %131 = vmatpush.msra.mxu0 0.0
    %132 = vmatpush.msra.mxu0 0.0
    %133 = vmatpush.msra.mxu0 0.0
    %134 = vmatpush.msra.mxu0 0.0
    %135 = vmatpush.msra.mxu0 0.0
    %136 = vmatpush.msra.mxu0 0.0
    %137 = vmatpush.msra.mxu0 0.0
    %138 = vmatpush.msra.mxu0 0.0
    %139 = vmatpush.msra.mxu0 0.0
    %140 = vmatpush.msra.mxu0 0.0
    %141 = vmatpush.msra.mxu0 0.0
    %142 = vmatpush.msra.mxu0 0.0
    %143 = vmatpush.msra.mxu0 %v23
    %144 = vmatpush.msra.mxu0 %v22
    %145 = vmatmul.f32.gmra.mxu0 %v124
    %v146 = vpop.f32.mrf.mxu0
    %v147 = vadd.f32 0.0, %v146
    %148 = vmatmul.f32.gmra.mxu0 %v127
    %v149 = vpop.f32.mrf.mxu0
    %v150 = vadd.f32 0.0, %v149
    %151 = vdwg.mxu0
    %v152 = vld [vmem:[%s4 + $0x2] sm:$0x1]
    %v153 = vld [vmem:[%s4 + $0x3] sm:$0x1]
    %v154 = vsel %vm70, %v147, 0.0
    %v155 = vsel %vm70, %v150, 0.0
    %v156 = vadd.f32 %v154, %v155
    %v157 = vrot.slane %v156, 4
    %v158 = vadd.f32 %v156, %v157
    %v159 = vrot.slane %v158, 2
    %v160 = vadd.f32 %v158, %v159
    %v161 = vrot.slane %v160, 1
    %v162 = vadd.f32 %v160, %v161
    %v163 = vmul.f32 %v162, %v86
    %v164 = vmul.f32 %v147, %v147
    %v165 = vmul.f32 %v150, %v150
    %v166 = vsel %vm70, %v164, 0.0
    %v167 = vsel %vm70, %v165, 0.0
    %v168 = vadd.f32 %v166, %v167
    %v169 = vrot.slane %v168, 4
    %v170 = vadd.f32 %v168, %v169
    %v171 = vrot.slane %v170, 2
    %v172 = vadd.f32 %v170, %v171
    %v173 = vrot.slane %v172, 1
    %v174 = vadd.f32 %v172, %v173
    %v175 = vmul.f32 %v174, %v86
    %v176 = vmul.f32 %v163, %v163
    %v177 = vsub.f32 %v175, %v176
    %v178 = vmax.f32 %v177, 0.0
    %v179 = vadd.f32 %v178, 1e-05
    %v180 = vrsqrt.pop %v179
    %v181 = vmul.f32 %v180, %v179
    %v182 = vmul.f32 %v181, %v180
    %v183 = vmul.f32 0.5, %v182
    %v184 = vsub.f32 1.5, %v183
    %v185 = vmul.f32 %v180, %v184
    %vm186 = vweird.f32 %v179
    %vm187 = vweird.f32 %v180
    %vm188 = vmor %vm186, %vm187
    %v189 = vsel %vm188, %v180, %v185
    %v190 = vmul.f32 %v152, %v189
    %v191 = vmul.f32 %v163, %v190
    %v192 = vsub.f32 %v153, %v191
    %v193 = vperm.slane %v190, 0
    %v194 = vmul.f32 %v147, %v193
    %v195 = vmul.f32 %v150, %v193
    %v196 = vperm.slane %v192, 0
    %v197 = vadd.f32 %v194, %v196
    %v198 = vadd.f32 %v195, %v196
    %v199 = vld [vmem:[%s2] sm:$0xff]
    %v200 = vld [vmem:[%s2 + $0x8] sm:$0xff]
    %v201 = vld [vmem:[%s2 + $0x10] sm:$0xff]
    %v202 = vld [vmem:[%s2 + $0x18] sm:$0xff]
    %v203 = vld [vmem:[%s2 + $0x20] sm:$0xff]
    %v204 = vld [vmem:[%s2 + $0x28] sm:$0xff]
    %v205 = vlaneseq
    %v206 = vand.u32 %v205, 127
    %207 = vset.pattern.permute.xlu0 0
    %208 = vperm.xlu0 %207, %v199
    %v209 = vpop.permute.xlu0 %208
    %210 = vset.pattern.permute.xlu0 0
    %211 = vperm.xlu0 %210, %v200
    %v212 = vpop.permute.xlu0 %211
    %213 = vset.pattern.permute.xlu0 0
    %214 = vperm.xlu0 %213, %v201
    %v215 = vpop.permute.xlu0 %214
    %216 = vset.pattern.permute.xlu0 0
    %217 = vperm.xlu0 %216, %v202
    %v218 = vpop.permute.xlu0 %217
    %219 = vset.pattern.permute.xlu0 0
    %220 = vperm.xlu0 %219, %v203
    %v221 = vpop.permute.xlu0 %220
    %222 = vset.pattern.permute.xlu0 0
    %223 = vperm.xlu0 %222, %v204
    %v224 = vpop.permute.xlu0 %223
    %vm225 = vcmp.eq.s32.totalorder %v206, %v209
    %vm226 = vcmp.eq.s32.totalorder %v206, %v212
    %vm227 = vcmp.eq.s32.totalorder %v206, %v215
    %vm228 = vcmp.eq.s32.totalorder %v206, %v218
    %vm229 = vcmp.eq.s32.totalorder %v206, %v221
    %vm230 = vcmp.eq.s32.totalorder %v206, %v224
    %v231 = vsel %vm225, 1, 0
    %v232 = vsel %vm226, 1, 0
    %v233 = vsel %vm227, 1, 0
    %v234 = vsel %vm228, 1, 0
    %v235 = vsel %vm229, 1, 0
    %v236 = vsel %vm230, 1, 0
    %v237 = vcvt.s32.f32 %v231
    %v238 = vcvt.s32.f32 %v232
    %v239 = vcvt.s32.f32 %v233
    %v240 = vcvt.s32.f32 %v234
    %v241 = vcvt.s32.f32 %v235
    %v242 = vcvt.s32.f32 %v236
    %243 = vset.pattern.permute.xlu0 1
    %244 = vperm.xlu0 %243, %v199
    %v245 = vpop.permute.xlu0 %244
    %246 = vset.pattern.permute.xlu0 1
    %247 = vperm.xlu0 %246, %v200
    %v248 = vpop.permute.xlu0 %247
    %249 = vset.pattern.permute.xlu0 1
    %250 = vperm.xlu0 %249, %v201
    %v251 = vpop.permute.xlu0 %250
    %252 = vset.pattern.permute.xlu0 1
    %253 = vperm.xlu0 %252, %v202
    %v254 = vpop.permute.xlu0 %253
    %255 = vset.pattern.permute.xlu0 1
    %256 = vperm.xlu0 %255, %v203
    %v257 = vpop.permute.xlu0 %256
    %258 = vset.pattern.permute.xlu0 1
    %259 = vperm.xlu0 %258, %v204
    %v260 = vpop.permute.xlu0 %259
    %vm261 = vcmp.eq.s32.totalorder %v206, %v245
    %vm262 = vcmp.eq.s32.totalorder %v206, %v248
    %vm263 = vcmp.eq.s32.totalorder %v206, %v251
    %vm264 = vcmp.eq.s32.totalorder %v206, %v254
    %vm265 = vcmp.eq.s32.totalorder %v206, %v257
    %vm266 = vcmp.eq.s32.totalorder %v206, %v260
    %v267 = vsel %vm261, 1, 0
    %v268 = vsel %vm262, 1, 0
    %v269 = vsel %vm263, 1, 0
    %v270 = vsel %vm264, 1, 0
    %v271 = vsel %vm265, 1, 0
    %v272 = vsel %vm266, 1, 0
    %v273 = vcvt.s32.f32 %v267
    %v274 = vcvt.s32.f32 %v268
    %v275 = vcvt.s32.f32 %v269
    %v276 = vcvt.s32.f32 %v270
    %v277 = vcvt.s32.f32 %v271
    %v278 = vcvt.s32.f32 %v272
    %v280 = vsel %vm70, %v237, 0
    %v283 = vsel %vm70, %v238, 0
    %v286 = vsel %vm70, %v239, 0
    %v289 = vsel %vm70, %v240, 0
    %v292 = vsel %vm70, %v241, 0
    %v295 = vsel %vm70, %v242, 0
    %297 = vmatpush.msra.mxu0 0.0
    %298 = vmatpush.msra.mxu0 0.0
    %299 = vmatpush.msra.mxu0 0.0
    %300 = vmatpush.msra.mxu0 0.0
    %301 = vmatpush.msra.mxu0 0.0
    %302 = vmatpush.msra.mxu0 0.0
    %303 = vmatpush.msra.mxu0 0.0
    %304 = vmatpush.msra.mxu0 0.0
    %305 = vmatpush.msra.mxu0 0.0
    %306 = vmatpush.msra.mxu0 0.0
    %307 = vmatpush.msra.mxu0 0.0
    %308 = vmatpush.msra.mxu0 0.0
    %309 = vmatpush.msra.mxu0 0.0
    %310 = vmatpush.msra.mxu0 0.0
    %311 = vmatpush.msra.mxu0 %v198
    %312 = vmatpush.msra.mxu0 %v197
    %313 = vmatmul.f32.gmra.mxu0 %v280
    %v314 = vpop.f32.mrf.mxu0
    %v315 = vadd.f32 0.0, %v314
    %316 = vmatmul.f32.gmra.mxu0 %v283
    %v317 = vpop.f32.mrf.mxu0
    %v318 = vadd.f32 0.0, %v317
    %319 = vmatmul.f32.gmra.mxu0 %v286
    %v320 = vpop.f32.mrf.mxu0
    %v321 = vadd.f32 0.0, %v320
    %322 = vmatmul.f32.gmra.mxu0 %v289
    %v323 = vpop.f32.mrf.mxu0
    %v324 = vadd.f32 0.0, %v323
    %325 = vmatmul.f32.gmra.mxu0 %v292
    %v326 = vpop.f32.mrf.mxu0
    %v327 = vadd.f32 0.0, %v326
    %328 = vmatmul.f32.gmra.mxu0 %v295
    %v329 = vpop.f32.mrf.mxu0
    %v330 = vadd.f32 0.0, %v329
    %331 = vdwg.mxu0
    %v333 = vsel %vm70, %v273, 0
    %v336 = vsel %vm70, %v274, 0
    %v339 = vsel %vm70, %v275, 0
    %v342 = vsel %vm70, %v276, 0
    %v345 = vsel %vm70, %v277, 0
    %v348 = vsel %vm70, %v278, 0
    %350 = vmatpush.msra.mxu0 0.0
    %351 = vmatpush.msra.mxu0 0.0
    %352 = vmatpush.msra.mxu0 0.0
    %353 = vmatpush.msra.mxu0 0.0
    %354 = vmatpush.msra.mxu0 0.0
    %355 = vmatpush.msra.mxu0 0.0
    %356 = vmatpush.msra.mxu0 0.0
    %357 = vmatpush.msra.mxu0 0.0
    %358 = vmatpush.msra.mxu0 0.0
    %359 = vmatpush.msra.mxu0 0.0
    %360 = vmatpush.msra.mxu0 0.0
    %361 = vmatpush.msra.mxu0 0.0
    %362 = vmatpush.msra.mxu0 0.0
    %363 = vmatpush.msra.mxu0 0.0
    %364 = vmatpush.msra.mxu0 %v198
    %365 = vmatpush.msra.mxu0 %v197
    %366 = vmatmul.f32.gmra.mxu0 %v333
    %v367 = vpop.f32.mrf.mxu0
    %v368 = vadd.f32 0.0, %v367
    %369 = vmatmul.f32.gmra.mxu0 %v336
    %v370 = vpop.f32.mrf.mxu0
    %v371 = vadd.f32 0.0, %v370
    %372 = vmatmul.f32.gmra.mxu0 %v339
    %v373 = vpop.f32.mrf.mxu0
    %v374 = vadd.f32 0.0, %v373
    %375 = vmatmul.f32.gmra.mxu0 %v342
    %v376 = vpop.f32.mrf.mxu0
    %v377 = vadd.f32 0.0, %v376
    %378 = vmatmul.f32.gmra.mxu0 %v345
    %v379 = vpop.f32.mrf.mxu0
    %v380 = vadd.f32 0.0, %v379
    %381 = vmatmul.f32.gmra.mxu0 %v348
    %v382 = vpop.f32.mrf.mxu0
    %v383 = vadd.f32 0.0, %v382
    %384 = vdwg.mxu0
    %v385 = vsub.f32 %v315, %v368
    %v386 = vsub.f32 %v318, %v371
    %v387 = vsub.f32 %v321, %v374
    %v388 = vsub.f32 %v324, %v377
    %v389 = vsub.f32 %v327, %v380
    %v390 = vsub.f32 %v330, %v383
    %v391 = vmul.f32 %v385, %v385
    %v392 = vmul.f32 %v386, %v386
    %v393 = vmul.f32 %v387, %v387
    %v394 = vmul.f32 %v388, %v388
    %v395 = vmul.f32 %v389, %v389
    %v396 = vmul.f32 %v390, %v390
    %v397 = vsel %vm70, %v391, 0.0
    %398 = vadd.xlane.f32.xlu0 %v397
    %v399 = vpop.xlane.xlu0 %398
    %v400 = vsel %vm70, %v392, 0.0
    %401 = vadd.xlane.f32.xlu0 %v400
    %v402 = vpop.xlane.xlu0 %401
    %v403 = vsel %vm70, %v393, 0.0
    %404 = vadd.xlane.f32.xlu0 %v403
    %v405 = vpop.xlane.xlu0 %404
    %v406 = vsel %vm70, %v394, 0.0
    %407 = vadd.xlane.f32.xlu0 %v406
    %v408 = vpop.xlane.xlu0 %407
    %v409 = vsel %vm70, %v395, 0.0
    %410 = vadd.xlane.f32.xlu0 %v409
    %v411 = vpop.xlane.xlu0 %410
    %v412 = vsel %vm70, %v396, 0.0
    %413 = vadd.xlane.f32.xlu0 %v412
    %v414 = vpop.xlane.xlu0 %413
    %v415 = vsub.f32 0.0, %v399
    %v416 = vsub.f32 0.0, %v402
    %v417 = vsub.f32 0.0, %v405
    %v418 = vsub.f32 0.0, %v408
    %v419 = vsub.f32 0.0, %v411
    %v420 = vsub.f32 0.0, %v414
    %v421 = vmul.f32 %v415, 1.442695
    %v422 = vpow.pop %v421
    %v423 = vmul.f32 %v416, 1.442695
    %v424 = vpow.pop %v423
    %v425 = vmul.f32 %v417, 1.442695
    %v426 = vpow.pop %v425
    %v427 = vmul.f32 %v418, 1.442695
    %v428 = vpow.pop %v427
    %v429 = vmul.f32 %v419, 1.442695
    %v430 = vpow.pop %v429
    %v431 = vmul.f32 %v420, 1.442695
    %v432 = vpow.pop %v431
    %v433 = vmul.f32 %v237, %v422
    %v434 = vmul.f32 %v238, %v424
    %v435 = vmul.f32 %v239, %v426
    %v436 = vmul.f32 %v240, %v428
    %v437 = vmul.f32 %v241, %v430
    %v438 = vmul.f32 %v242, %v432
    %439 = vxpose.xlu0.b32.start [1/16] %v433, 128
    %440 = vxpose.xlu0.b32.cont [2/16] %v434, 128
    %441 = vxpose.xlu0.b32.cont [3/16] %v435, 128
    %442 = vxpose.xlu0.b32.cont [4/16] %v436, 128
    %443 = vxpose.xlu0.b32.cont [5/16] %v437, 128
    %444 = vxpose.xlu0.b32.cont [6/16] %v438, 128
    %445 = vxpose.xlu0.b32.cont [7/16] 0.0, 128
    %446 = vxpose.xlu0.b32.cont [8/16] 0.0, 128
    %447 = vxpose.xlu0.b32.cont [9/16] 0.0, 128
    %448 = vxpose.xlu0.b32.cont [10/16] 0.0, 128
    %449 = vxpose.xlu0.b32.cont [11/16] 0.0, 128
    %450 = vxpose.xlu0.b32.cont [12/16] 0.0, 128
    %451 = vxpose.xlu0.b32.cont [13/16] 0.0, 128
    %452 = vxpose.xlu0.b32.cont [14/16] 0.0, 128
    %453 = vxpose.xlu0.b32.cont [15/16] 0.0, 128
    %454 = vxpose.xlu0.b32.end [16/16] 0.0, 128
    %v455 = vpop.trf.xlu0
    %v456 = vpop.trf.xlu0
    %v457 = vpop.trf.xlu0
    %v458 = vpop.trf.xlu0
    %v459 = vpop.trf.xlu0
    %v460 = vpop.trf.xlu0
    %v461 = vpop.trf.xlu0
    %v462 = vpop.trf.xlu0
    %v463 = vpop.trf.xlu0
    %v464 = vpop.trf.xlu0
    %v465 = vpop.trf.xlu0
    %v466 = vpop.trf.xlu0
    %v467 = vpop.trf.xlu0
    %v468 = vpop.trf.xlu0
    %v469 = vpop.trf.xlu0
    %v470 = vpop.trf.xlu0
    %vm471 = vcmask 392192
    %v473 = vsel %vm471, %v455, 0
    %v476 = vsel %vm471, %v456, 0
    %478 = vmatpush.msra.mxu0 0.0
    %479 = vmatpush.msra.mxu0 0.0
    %480 = vmatpush.msra.mxu0 0.0
    %481 = vmatpush.msra.mxu0 0.0
    %482 = vmatpush.msra.mxu0 0.0
    %483 = vmatpush.msra.mxu0 0.0
    %484 = vmatpush.msra.mxu0 0.0
    %485 = vmatpush.msra.mxu0 0.0
    %486 = vmatpush.msra.mxu0 0.0
    %487 = vmatpush.msra.mxu0 0.0
    %488 = vmatpush.msra.mxu0 %v278
    %489 = vmatpush.msra.mxu0 %v277
    %490 = vmatpush.msra.mxu0 %v276
    %491 = vmatpush.msra.mxu0 %v275
    %492 = vmatpush.msra.mxu0 %v274
    %493 = vmatpush.msra.mxu0 %v273
    %494 = vmatmul.f32.gmra.mxu0 %v473
    %v495 = vpop.f32.mrf.mxu0
    %v496 = vadd.f32 0.0, %v495
    %497 = vmatmul.f32.gmra.mxu0 %v476
    %v498 = vpop.f32.mrf.mxu0
    %v499 = vadd.f32 0.0, %v498
    %500 = vdwg.mxu0
    %v501 = vsel %vm70, %v496, 0.0
    %502 = vadd.xlane.f32.xlu0 %v501
    %v503 = vpop.xlane.xlu0 %502
    %v504 = vsel %vm70, %v499, 0.0
    %505 = vadd.xlane.f32.xlu0 %v504
    %v506 = vpop.xlane.xlu0 %505
    %v507 = vadd.f32 %v503, 1e-16
    %v508 = vadd.f32 %v506, 1e-16
    %v509 = vrcp.pop %v507
    %v510 = vrcp.pop %v508
    %v511 = vmul.f32 %v507, %v509
    %v512 = vmul.f32 %v508, %v510
    %v513 = vsub.f32 2.0, %v511
    %v514 = vsub.f32 2.0, %v512
    %v515 = vmul.f32 %v509, %v513
    %v516 = vmul.f32 %v510, %v514
    %v517 = vmul.f32 %v496, %v515
    %v518 = vmul.f32 %v499, %v516
    %v520 = vsel %vm70, %v121, 0
    %v523 = vsel %vm70, %v122, 0
    %525 = vmatpush.msra.mxu0 0.0
    %526 = vmatpush.msra.mxu0 0.0
    %527 = vmatpush.msra.mxu0 0.0
    %528 = vmatpush.msra.mxu0 0.0
    %529 = vmatpush.msra.mxu0 0.0
    %530 = vmatpush.msra.mxu0 0.0
    %531 = vmatpush.msra.mxu0 0.0
    %532 = vmatpush.msra.mxu0 0.0
    %533 = vmatpush.msra.mxu0 0.0
    %534 = vmatpush.msra.mxu0 0.0
    %535 = vmatpush.msra.mxu0 0.0
    %536 = vmatpush.msra.mxu0 0.0
    %537 = vmatpush.msra.mxu0 0.0
    %538 = vmatpush.msra.mxu0 0.0
    %539 = vmatpush.msra.mxu0 %v31
    %540 = vmatpush.msra.mxu0 %v30
    %541 = vmatmul.f32.gmra.mxu0 %v520
    %v542 = vpop.f32.mrf.mxu0
    %v543 = vadd.f32 0.0, %v542
    %544 = vmatmul.f32.gmra.mxu0 %v523
    %v545 = vpop.f32.mrf.mxu0
    %v546 = vadd.f32 0.0, %v545
    %547 = vdwg.mxu0
    %v549 = vsel %vm70, %v517, 0
    %v552 = vsel %vm70, %v518, 0
    %554 = vmatpush.msra.mxu0 0.0
    %555 = vmatpush.msra.mxu0 0.0
    %556 = vmatpush.msra.mxu0 0.0
    %557 = vmatpush.msra.mxu0 0.0
    %558 = vmatpush.msra.mxu0 0.0
    %559 = vmatpush.msra.mxu0 0.0
    %560 = vmatpush.msra.mxu0 0.0
    %561 = vmatpush.msra.mxu0 0.0
    %562 = vmatpush.msra.mxu0 0.0
    %563 = vmatpush.msra.mxu0 0.0
    %564 = vmatpush.msra.mxu0 0.0
    %565 = vmatpush.msra.mxu0 0.0
    %566 = vmatpush.msra.mxu0 0.0
    %567 = vmatpush.msra.mxu0 0.0
    %568 = vmatpush.msra.mxu0 %v122
    %569 = vmatpush.msra.mxu0 %v121
    %570 = vmatmul.f32.gmra.mxu0 %v549
    %v571 = vpop.f32.mrf.mxu0
    %v572 = vadd.f32 0.0, %v571
    %573 = vmatmul.f32.gmra.mxu0 %v552
    %v574 = vpop.f32.mrf.mxu0
    %v575 = vadd.f32 0.0, %v574
    %576 = vdwg.mxu0
    %v578 = vsel %vm70, %v572, 0
    %v581 = vsel %vm70, %v575, 0
    %583 = vmatpush.msra.mxu0 0.0
    %584 = vmatpush.msra.mxu0 0.0
    %585 = vmatpush.msra.mxu0 0.0
    %586 = vmatpush.msra.mxu0 0.0
    %587 = vmatpush.msra.mxu0 0.0
    %588 = vmatpush.msra.mxu0 0.0
    %589 = vmatpush.msra.mxu0 0.0
    %590 = vmatpush.msra.mxu0 0.0
    %591 = vmatpush.msra.mxu0 0.0
    %592 = vmatpush.msra.mxu0 0.0
    %593 = vmatpush.msra.mxu0 0.0
    %594 = vmatpush.msra.mxu0 0.0
    %595 = vmatpush.msra.mxu0 0.0
    %596 = vmatpush.msra.mxu0 0.0
    %597 = vmatpush.msra.mxu0 %v33
    %598 = vmatpush.msra.mxu0 %v32
    %599 = vmatmul.f32.gmra.mxu0 %v578
    %v600 = vpop.f32.mrf.mxu0
    %v601 = vadd.f32 0.0, %v600
    %602 = vmatmul.f32.gmra.mxu0 %v581
    %v603 = vpop.f32.mrf.mxu0
    %v604 = vadd.f32 0.0, %v603
    %605 = vdwg.mxu0
    %v606 = vadd.f32 %v543, %v601
    %v607 = vadd.f32 %v546, %v604
    %608 = vmatpush.msra.mxu0 0.0
    %609 = vmatpush.msra.mxu0 0.0
    %610 = vmatpush.msra.mxu0 0.0
    %611 = vmatpush.msra.mxu0 0.0
    %612 = vmatpush.msra.mxu0 0.0
    %613 = vmatpush.msra.mxu0 0.0
    %614 = vmatpush.msra.mxu0 0.0
    %615 = vmatpush.msra.mxu0 0.0
    %616 = vmatpush.msra.mxu0 0.0
    %617 = vmatpush.msra.mxu0 0.0
    %618 = vmatpush.msra.mxu0 0.0
    %619 = vmatpush.msra.mxu0 0.0
    %620 = vmatpush.msra.mxu0 0.0
    %621 = vmatpush.msra.mxu0 0.0
    %622 = vmatpush.msra.mxu0 %v607
    %623 = vmatpush.msra.mxu0 %v606
    %624 = vmatmul.f32.gmra.mxu0 %v549
    %v625 = vpop.f32.mrf.mxu0
    %v626 = vadd.f32 0.0, %v625
    %627 = vmatmul.f32.gmra.mxu0 %v552
    %v628 = vpop.f32.mrf.mxu0
    %v629 = vadd.f32 0.0, %v628
    %630 = vdwg.mxu0
    %v632 = vsel %vm70, %v626, 0
    %v635 = vsel %vm70, %v629, 0
    %637 = vmatpush.msra.mxu0 0.0
    %638 = vmatpush.msra.mxu0 0.0
    %639 = vmatpush.msra.mxu0 0.0
    %640 = vmatpush.msra.mxu0 0.0
    %641 = vmatpush.msra.mxu0 0.0
    %642 = vmatpush.msra.mxu0 0.0
    %643 = vmatpush.msra.mxu0 0.0
    %644 = vmatpush.msra.mxu0 0.0
    %645 = vmatpush.msra.mxu0 0.0
    %646 = vmatpush.msra.mxu0 0.0
    %647 = vmatpush.msra.mxu0 0.0
    %648 = vmatpush.msra.mxu0 0.0
    %649 = vmatpush.msra.mxu0 0.0
    %650 = vmatpush.msra.mxu0 0.0
    %651 = vmatpush.msra.mxu0 %v33
    %652 = vmatpush.msra.mxu0 %v32
    %653 = vmatmul.f32.gmra.mxu0 %v632
    %v654 = vpop.f32.mrf.mxu0
    %v655 = vadd.f32 0.0, %v654
    %656 = vmatmul.f32.gmra.mxu0 %v635
    %v657 = vpop.f32.mrf.mxu0
    %v658 = vadd.f32 0.0, %v657
    %659 = vdwg.mxu0
    %v660 = vadd.f32 %v543, %v655
    %v661 = vadd.f32 %v546, %v658
    %v663 = vsel %vm70, %v660, 0
    %v666 = vsel %vm70, %v661, 0
    %668 = vmatpush.msra.mxu0 0.0
    %669 = vmatpush.msra.mxu0 0.0
    %670 = vmatpush.msra.mxu0 0.0
    %671 = vmatpush.msra.mxu0 0.0
    %672 = vmatpush.msra.mxu0 0.0
    %673 = vmatpush.msra.mxu0 0.0
    %674 = vmatpush.msra.mxu0 0.0
    %675 = vmatpush.msra.mxu0 0.0
    %676 = vmatpush.msra.mxu0 0.0
    %677 = vmatpush.msra.mxu0 0.0
    %678 = vmatpush.msra.mxu0 0.0
    %679 = vmatpush.msra.mxu0 0.0
    %680 = vmatpush.msra.mxu0 0.0
    %681 = vmatpush.msra.mxu0 0.0
    %682 = vmatpush.msra.mxu0 %v25
    %683 = vmatpush.msra.mxu0 %v24
    %684 = vmatmul.f32.gmra.mxu0 %v663
    %v685 = vpop.f32.mrf.mxu0
    %v686 = vadd.f32 0.0, %v685
    %687 = vmatmul.f32.gmra.mxu0 %v666
    %v688 = vpop.f32.mrf.mxu0
    %v689 = vadd.f32 0.0, %v688
    %690 = vdwg.mxu0
    %v691 = vld [vmem:[%s4 + $0x4] sm:$0x1]
    %v692 = vld [vmem:[%s4 + $0x5] sm:$0x1]
    %v693 = vsel %vm70, %v686, 0.0
    %v694 = vsel %vm70, %v689, 0.0
    %v695 = vadd.f32 %v693, %v694
    %v696 = vrot.slane %v695, 4
    %v697 = vadd.f32 %v695, %v696
    %v698 = vrot.slane %v697, 2
    %v699 = vadd.f32 %v697, %v698
    %v700 = vrot.slane %v699, 1
    %v701 = vadd.f32 %v699, %v700
    %v702 = vmul.f32 %v701, %v86
    %v703 = vmul.f32 %v686, %v686
    %v704 = vmul.f32 %v689, %v689
    %v705 = vsel %vm70, %v703, 0.0
    %v706 = vsel %vm70, %v704, 0.0
    %v707 = vadd.f32 %v705, %v706
    %v708 = vrot.slane %v707, 4
    %v709 = vadd.f32 %v707, %v708
    %v710 = vrot.slane %v709, 2
    %v711 = vadd.f32 %v709, %v710
    %v712 = vrot.slane %v711, 1
    %v713 = vadd.f32 %v711, %v712
    %v714 = vmul.f32 %v713, %v86
    %v715 = vmul.f32 %v702, %v702
    %v716 = vsub.f32 %v714, %v715
    %v717 = vmax.f32 %v716, 0.0
    %v718 = vadd.f32 %v717, 1e-05
    %v719 = vrsqrt.pop %v718
    %v720 = vmul.f32 %v719, %v718
    %v721 = vmul.f32 %v720, %v719
    %v722 = vmul.f32 0.5, %v721
    %v723 = vsub.f32 1.5, %v722
    %v724 = vmul.f32 %v719, %v723
    %vm725 = vweird.f32 %v718
    %vm726 = vweird.f32 %v719
    %vm727 = vmor %vm725, %vm726
    %v728 = vsel %vm727, %v719, %v724
    %v729 = vmul.f32 %v691, %v728
    %v730 = vmul.f32 %v702, %v729
    %v731 = vsub.f32 %v692, %v730
    %v732 = vperm.slane %v729, 0
    %v733 = vmul.f32 %v686, %v732
    %v734 = vmul.f32 %v689, %v732
    %v735 = vperm.slane %v731, 0
    %v736 = vadd.f32 %v733, %v735
    %v737 = vadd.f32 %v734, %v735
    %vm738 = vcmp.ge.f32.partialorder %v736, 0.0
    %vm739 = vcmp.ge.f32.partialorder %v737, 0.0
    %v740 = vmul.f32 %v736, 0.01
    %v741 = vmul.f32 %v737, 0.01
    %v742 = vsel %vm738, %v736, %v740
    %v743 = vsel %vm739, %v737, %v741
    %744 = vmatpush.msra.mxu0 0.0
    %745 = vmatpush.msra.mxu0 0.0
    %746 = vmatpush.msra.mxu0 0.0
    %747 = vmatpush.msra.mxu0 0.0
    %748 = vmatpush.msra.mxu0 0.0
    %749 = vmatpush.msra.mxu0 0.0
    %750 = vmatpush.msra.mxu0 0.0
    %751 = vmatpush.msra.mxu0 0.0
    %752 = vmatpush.msra.mxu0 0.0
    %753 = vmatpush.msra.mxu0 0.0
    %754 = vmatpush.msra.mxu0 0.0
    %755 = vmatpush.msra.mxu0 0.0
    %756 = vmatpush.msra.mxu0 0.0
    %757 = vmatpush.msra.mxu0 0.0
    %758 = vmatpush.msra.mxu0 %v29
    %759 = vmatpush.msra.mxu0 %v28
    %760 = vmatmul.f32.gmra.mxu0 %v124
    %v761 = vpop.f32.mrf.mxu0
    %v762 = vadd.f32 0.0, %v761
    %763 = vmatmul.f32.gmra.mxu0 %v127
    %v764 = vpop.f32.mrf.mxu0
    %v765 = vadd.f32 0.0, %v764
    %766 = vdwg.mxu0
    %v768 = vsel %vm70, %v742, 0
    %v771 = vsel %vm70, %v743, 0
    %773 = vmatpush.msra.mxu0 0.0
    %774 = vmatpush.msra.mxu0 0.0
    %775 = vmatpush.msra.mxu0 0.0
    %776 = vmatpush.msra.mxu0 0.0
    %777 = vmatpush.msra.mxu0 0.0
    %778 = vmatpush.msra.mxu0 0.0
    %779 = vmatpush.msra.mxu0 0.0
    %780 = vmatpush.msra.mxu0 0.0
    %781 = vmatpush.msra.mxu0 0.0
    %782 = vmatpush.msra.mxu0 0.0
    %783 = vmatpush.msra.mxu0 0.0
    %784 = vmatpush.msra.mxu0 0.0
    %785 = vmatpush.msra.mxu0 0.0
    %786 = vmatpush.msra.mxu0 0.0
    %787 = vmatpush.msra.mxu0 %v27
    %788 = vmatpush.msra.mxu0 %v26
    %789 = vmatmul.f32.gmra.mxu0 %v768
    %v790 = vpop.f32.mrf.mxu0
    %v791 = vadd.f32 %v762, %v790
    %792 = vmatmul.f32.gmra.mxu0 %v771
    %v793 = vpop.f32.mrf.mxu0
    %v794 = vadd.f32 %v765, %v793
    %795 = vdwg.mxu0
    %v796 = vld [vmem:[%s4 + $0x6] sm:$0x1]
    %v797 = vld [vmem:[%s4 + $0x7] sm:$0x1]
    %v798 = vsel %vm70, %v791, 0.0
    %v799 = vsel %vm70, %v794, 0.0
    %v800 = vadd.f32 %v798, %v799
    %v801 = vrot.slane %v800, 4
    %v802 = vadd.f32 %v800, %v801
    %v803 = vrot.slane %v802, 2
    %v804 = vadd.f32 %v802, %v803
    %v805 = vrot.slane %v804, 1
    %v806 = vadd.f32 %v804, %v805
    %v807 = vmul.f32 %v806, %v86
    %v808 = vmul.f32 %v791, %v791
    %v809 = vmul.f32 %v794, %v794
    %v810 = vsel %vm70, %v808, 0.0
    %v811 = vsel %vm70, %v809, 0.0
    %v812 = vadd.f32 %v810, %v811
    %v813 = vrot.slane %v812, 4
    %v814 = vadd.f32 %v812, %v813
    %v815 = vrot.slane %v814, 2
    %v816 = vadd.f32 %v814, %v815
    %v817 = vrot.slane %v816, 1
    %v818 = vadd.f32 %v816, %v817
    %v819 = vmul.f32 %v818, %v86
    %v820 = vmul.f32 %v807, %v807
    %v821 = vsub.f32 %v819, %v820
    %v822 = vmax.f32 %v821, 0.0
    %v823 = vadd.f32 %v822, 1e-05
    %v824 = vrsqrt.pop %v823
    %v825 = vmul.f32 %v824, %v823
    %v826 = vmul.f32 %v825, %v824
    %v827 = vmul.f32 0.5, %v826
    %v828 = vsub.f32 1.5, %v827
    %v829 = vmul.f32 %v824, %v828
    %vm830 = vweird.f32 %v823
    %vm831 = vweird.f32 %v824
    %vm832 = vmor %vm830, %vm831
    %v833 = vsel %vm832, %v824, %v829
    %v834 = vmul.f32 %v796, %v833
    %v835 = vmul.f32 %v807, %v834
    %v836 = vsub.f32 %v797, %v835
    %v837 = vperm.slane %v834, 0
    %v838 = vmul.f32 %v791, %v837
    %v839 = vmul.f32 %v794, %v837
    %v840 = vperm.slane %v836, 0
    %v841 = vadd.f32 %v838, %v840
    %v842 = vadd.f32 %v839, %v840
    %vm843 = vcmp.ge.f32.partialorder %v841, 0.0
    %vm844 = vcmp.ge.f32.partialorder %v842, 0.0
    %v845 = vmul.f32 %v841, 0.01
    %v846 = vmul.f32 %v842, 0.01
    %v847 = vsel %vm843, %v841, %v845
    %v848 = vsel %vm844, %v842, %v846
    %849 = vst.msk [vmem:[#allocation2] sm:$0xff] %vm70, %v847
    %850 = vst.msk [vmem:[#allocation2 + $0x8] sm:$0xff] %vm70, %v848
    // Predicated region
    $region22: #{tpu_custom_call.1} parent=1 // pred_check
      _
    $region23: #{tpu_custom_call.1} parent=1 // pred_check_branch
      %852 = sbr.rel (0) target = $region25
    $region24: #{tpu_custom_call.1} parent=1 // pred_region
      %854 = vsyncadd [#allocation3], 0
      %s855 = sshll.u32 [#allocation2], 4
      %s856 = int_to_ptr.vmem [resolvable:$true] %s855
      %s857 = sshll.u32 %s5, 4
      %s858 = int_to_ptr.hbm [resolvable:$true] %s857
      %863 = dma.vmem_to_hbm [thread:$0]  %s856, 256, %s858, [#allocation3], 128, 128, 8
    $region25: #{tpu_custom_call.1} parent=1 // pred_fallthru
      _
    // Predicated region
    $region26: #{tpu_custom_call.1} parent=1 // pred_check
      _
    $region27: #{tpu_custom_call.1} parent=1 // pred_check_branch
      %865 = sbr.rel (0) target = $region29
    $region28: #{tpu_custom_call.1} parent=1 // pred_region
      %867 = dma.done [#allocation3], 256
    $region29: #{tpu_custom_call.1} parent=1 // pred_fallthru
      _
    %868 = vsyncpa [#allocation3], 1

</llo_original>
